<compile_context>
chip_gen: v5e
topology: v5e:2x2
jax: 0.10.0
libtpu: 0.0.40
codegen_flags: <defaults>
</compile_context>

<pallas_src>
import math

import jax
import jax.numpy as jnp
from jax.experimental import pallas as pl
from jax.experimental.pallas import tpu as pltpu


# ---------------------------------------------------------------------------
# Kernels
# ---------------------------------------------------------------------------
def _glu_silu_split_kernel(x1_ref, x2_ref, o_ref):
    """Lane-aligned fast path: x1, x2 are separate (tile_m, tile_h) blocks."""
    x1 = x1_ref[...].astype(jnp.float32)
    x2 = x2_ref[...].astype(jnp.float32)
    o_ref[...] = (x1 * (x2 * jax.nn.sigmoid(x2))).astype(o_ref.dtype)


def _glu_silu_fused_kernel(x_ref, o_ref):
    """Fallback path (H not a multiple of 128): single (tile_m, 2H) block."""
    h = o_ref.shape[-1]
    x = x_ref[...].astype(jnp.float32)
    gate = x[:, :h]
    up = x[:, h:]
    o_ref[...] = (gate * (up * jax.nn.sigmoid(up))).astype(o_ref.dtype)


# ---------------------------------------------------------------------------
# Tile selection
# ---------------------------------------------------------------------------
_VMEM_TILE_BUDGET = 32 << 20   # total bytes for double-buffered in/out tiles
_VMEM_LIMIT = 48 << 20         # scoped VMEM limit (safe on v5e/v6e/v7x)
_MAX_TILE_M = 1024
_MAX_TILE_H = 512


def _pick_tiles(m: int, h: int, itemsize: int, aligned: bool):
    """Return (tile_m, tile_h, m_padded)."""
    pack = max(8, 32 // itemsize)          # sublane pack: 8 f32, 16 bf16/f16

    if aligned:
        # Largest multiple of 128 that divides H, capped at _MAX_TILE_H.
        tile_h = 128
        for cand in range(min(h, _MAX_TILE_H), 127, -128):
            if h % cand == 0:
                tile_h = cand
                break
        width = tile_h                     # 2 input halves + 1 output, each tile_h wide
    else:
        tile_h = h                         # full-width block: (tile_m, 2H) in, (tile_m, H) out
        width = h

    # 2 (double buffer) * 3 * width * tile_m * itemsize <= budget
    max_tile_m = _VMEM_TILE_BUDGET // (6 * width * itemsize)
    target = int(min(_MAX_TILE_M, max(pack, max_tile_m)))
    target = max(pack, (target // pack) * pack)
    m_ceil = ((m + pack - 1) // pack) * pack
    target = min(target, m_ceil)

    # Prefer a tile_m that divides M exactly (avoids a full-tensor jnp.pad copy).
    if m % pack == 0:
        lo = max(pack, target // 4)
        for cand in range(target, lo - 1, -pack):
            if m % cand == 0:
                return cand, tile_h, m
    m_pad = ((m + target - 1) // target) * target
    return target, tile_h, m_pad


# ---------------------------------------------------------------------------
# Wrapper
# ---------------------------------------------------------------------------
def glu_activation(x: jax.Array) -> jax.Array:
    """x: (..., 2*H) -> (..., H), computing x[..., :H] * silu(x[..., H:])."""
    *lead, two_h = x.shape
    assert two_h % 2 == 0, "last dim must be even for GLU"
    h = two_h // 2

    m = math.prod(lead) if lead else 1
    x2d = x.reshape(m, two_h)

    itemsize = jnp.dtype(x.dtype).itemsize
    aligned = (h % 128 == 0)

    tile_m, tile_h, m_pad = _pick_tiles(m, h, itemsize, aligned)
    if m_pad != m:
        # Ragged-row tail: pad only when no reasonable divisor tile_m exists.
        x2d = jnp.pad(x2d, ((0, m_pad - m), (0, 0)))

    grid_m = m_pad // tile_m

    if aligned:
        grid_h = h // tile_h
        out = pl.pallas_call(
            _glu_silu_split_kernel,
            out_shape=jax.ShapeDtypeStruct((m_pad, h), x.dtype),
            grid=(grid_m, grid_h),
            in_specs=[
                # first chunk (gate)
                pl.BlockSpec((tile_m, tile_h), lambda i, j: (i, j)),
                # second chunk (goes through SiLU): lane-offset by H via block index
                pl.BlockSpec((tile_m, tile_h), lambda i, j, gh=grid_h: (i, j + gh)),
            ],
            out_specs=pl.BlockSpec((tile_m, tile_h), lambda i, j: (i, j)),
            compiler_params=pltpu.CompilerParams(
                dimension_semantics=("parallel", "parallel"),
                vmem_limit_bytes=_VMEM_LIMIT,
            ),
        )(x2d, x2d)
    else:
        out = pl.pallas_call(
            _glu_silu_fused_kernel,
            out_shape=jax.ShapeDtypeStruct((m_pad, h), x.dtype),
            grid=(grid_m,),
            in_specs=[pl.BlockSpec((tile_m, two_h), lambda i: (i, 0))],
            out_specs=pl.BlockSpec((tile_m, h), lambda i: (i, 0)),
            compiler_params=pltpu.CompilerParams(
                dimension_semantics=("parallel",),
                vmem_limit_bytes=_VMEM_LIMIT,
            ),
        )(x2d)

    if m_pad != m:
        out = out[:m]
    return out.reshape(*lead, h)


def _reference(x):
    h = x.shape[-1] // 2
    a, b = x[..., :h], x[..., h:]
    return a * (b * jax.nn.sigmoid(b))


# ---------------------------------------------------------------------------
# Self-test
# ---------------------------------------------------------------------------
if __name__ == "__main__":
    key = jax.random.PRNGKey(0)
    k_small, k_big = jax.random.split(key)

    # Small, unaligned-H case (exercises the fused fallback path).
    batch, seq, hidden = 2, 8, 32
    x_small = jax.random.normal(k_small, (batch, seq, 2 * hidden), dtype=jnp.float32)
    y_small = jax.block_until_ready(glu_activation(x_small))
    assert y_small.shape == (batch, seq, hidden)
    assert jnp.allclose(y_small, _reference(x_small), atol=1e-5, rtol=1e-5)

    # Lane-aligned case (exercises the split-input, 2-D-tiled fast path).
    x_big = jax.random.normal(k_big, (2, 128, 2 * 256), dtype=jnp.float32)
    y_big = jax.block_until_ready(glu_activation(x_big))
    assert y_big.shape == (2, 128, 256)
    assert jnp.allclose(y_big, _reference(x_big), atol=1e-5, rtol=1e-5)

    print("KERNEL_OK")
</pallas_src>

<mosaic_0001>
module attributes {stable_mosaic.version = 11 : i64} {
  func.func @_glu_silu_fused_kernel(%arg0: i32, %arg1: memref<16x64xf32, #tpu.memory_space<vmem>>, %arg2: memref<16x32xf32, #tpu.memory_space<vmem>>) attributes {dimension_semantics = [#tpu.dimension_semantics<parallel>], iteration_bounds = array<i64: 1>, scalar_prefetch = 0 : i64, scratch_operands = 0 : i64, tpu.core_type = #tpu.core_type<tc>, window_params = [{transform_indices = @transform_0, window_bounds = array<i64: 16, 64>}, {transform_indices = @transform_1, window_bounds = array<i64: 16, 32>}]} {
    %c0 = arith.constant 0 : index
    %c0_0 = arith.constant 0 : index
    %0 = vector.load %arg1[%c0, %c0_0] : memref<16x64xf32, #tpu.memory_space<vmem>>, vector<16x64xf32>
    %1 = vector.extract_strided_slice %0 {offsets = [0, 0], sizes = [16, 32], strides = [1, 1]} : vector<16x64xf32> to vector<16x32xf32>
    %2 = vector.extract_strided_slice %0 {offsets = [0, 32], sizes = [16, 32], strides = [1, 1]} : vector<16x64xf32> to vector<16x32xf32>
    %3 = arith.negf %2 : vector<16x32xf32>
    %4 = math.exp %3 : vector<16x32xf32>
    %cst = arith.constant 1.000000e+00 : f32
    %5 = vector.broadcast %cst : f32 to vector<16x32xf32>
    %6 = arith.addf %5, %4 : vector<16x32xf32>
    %7 = arith.divf %5, %6 : vector<16x32xf32>
    %8 = arith.mulf %2, %7 : vector<16x32xf32>
    %9 = arith.mulf %1, %8 : vector<16x32xf32>
    %c0_1 = arith.constant 0 : index
    %c0_2 = arith.constant 0 : index
    %10 = vector.load %arg2[%c0_1, %c0_2] : memref<16x32xf32, #tpu.memory_space<vmem>>, vector<16x32xf32>
    tpu.vector_store %arg2[%c0_1, %c0_2], %9 {strides = array<i32>} : memref<16x32xf32, #tpu.memory_space<vmem>>, vector<16x32xf32>,
    return
  }
  func.func @transform_0(%arg0: i32) -> (i32, i32) {
    %c0_i32 = arith.constant 0 : i32
    %c0_i32_0 = arith.constant 0 : i32
    return %arg0, %c0_i32 : i32, i32
  }
  func.func @transform_1(%arg0: i32) -> (i32, i32) {
    %c0_i32 = arith.constant 0 : i32
    %c0_i32_0 = arith.constant 0 : i32
    return %arg0, %c0_i32 : i32, i32
  }
}

</mosaic_0001>

<llo_original>
// kernel: tpu_custom_call.1
$region0: #{tpu_custom_call.1}
  #allocation0 [shape = 'u32[]', space=smem, size = 0x4, offset = 0x4, fixed_abs, tag = 'smem constant byte address 0x4 - core index']
  #allocation1 [shape = 'u32[72,128]{1,0:T(1,128)}', space=vmem, size = 0x9000, scoped, tag = 'internal scratch']
  %s0 = inlined_call_operand.hbm [shape: f32[16,64], index: 0, kind: input, shape index: {}]
  %s1 = inlined_call_operand.hbm [shape: f32[16,32], index: 1, kind: output, shape index: {}]
  %s2 = sld [smem:[#allocation0]]
  $region18: #{tpu_custom_call.1} parent=0
    _
  %s4 = ssub.s32 1, %s2
  %s5 = scalar_select 0, %s4, %s2
  $region1: #{tpu_custom_call.1} parent=0
    #allocation2 [shape = 'u8[8192]{0}', space=vmem, size = 0x2000, scoped, tag = 'input window, operand 0, single buffered']
    #allocation3 [shape = 's32[1]{0}', space=sflag, size = 0x4, scoped, tag = 'scoped memory for tpu_custom_call.1']
    #allocation4 [shape = 's32[1]{0}', space=sflag, size = 0x4, scoped, tag = 'scoped memory for tpu_custom_call.1']
    #allocation5 [shape = 'u8[8192]{0}', space=vmem, size = 0x2000, scoped, tag = 'output window, operand 0, single buffered']
    %6 = vsyncpa [#allocation3], 0
    %7 = vsyncpa [#allocation4], 0
    // Predicated region
    $region2: #{tpu_custom_call.1} parent=1 // pred_check
      _
    $region3: #{tpu_custom_call.1} parent=1 // pred_check_branch
      %9 = sbr.rel (0) target = $region5
    $region4: #{tpu_custom_call.1} parent=1 // pred_region
      %11 = vsyncadd [#allocation3], 0
      %s12 = sshll.u32 %s0, 4
      %s13 = int_to_ptr.hbm [resolvable:$true] %s12
      %s14 = sshll.u32 [#allocation2], 4
      %s15 = int_to_ptr.vmem [resolvable:$true] %s14
      %20 = dma.hbm_to_vmem [thread:$0]  %s13, 256, %s15, [#allocation3], 128, 128, 8
    $region5: #{tpu_custom_call.1} parent=1 // pred_fallthru
      _
    // Predicated region
    $region6: #{tpu_custom_call.1} parent=1 // pred_check
      _
    $region7: #{tpu_custom_call.1} parent=1 // pred_check_branch
      %22 = sbr.rel (0) target = $region9
    $region8: #{tpu_custom_call.1} parent=1 // pred_region
      %24 = dma.done [#allocation3], 256
    $region9: #{tpu_custom_call.1} parent=1 // pred_fallthru
      _
    %v25 = vld [vmem:[#allocation2] sm:$0xff]
    %v26 = vld [vmem:[#allocation2 + $0x8] sm:$0xff]
    %v27 = vxor.u32 %v25, 2147483648
    %v28 = vxor.u32 %v26, 2147483648
    %v29 = vmul.f32 %v27, 1.442695
    %v30 = vpow.pop %v29
    %v31 = vmul.f32 %v28, 1.442695
    %v32 = vpow.pop %v31
    %v33 = vadd.f32 %v30, 1.0
    %v34 = vadd.f32 %v32, 1.0
    %v35 = vrcp.pop %v33
    %v36 = vmul.f32 %v33, %v35
    %v37 = vsub.f32 1.0, %v36
    %v38 = vmul.f32 %v35, %v37
    %v39 = vadd.f32 %v35, %v38
    %vm40 = vweird.f32 %v33
    %vm41 = vweird.f32 %v35
    %vm42 = vmor %vm40, %vm41
    %v43 = vsel %vm42, %v35, %v39
    %v44 = vand.u32 2147483647, %v33
    %vm45 = vcmp.eq.f32.partialorder %v44, 8.507059e+37
    %v46 = vand.u32 %v33, 2147483648
    %v47 = vor.u32 1.1754944e-38, %v46
    %v48 = vsel %vm45, %v47, %v43
    %v49 = vmul.f32 1.0, %v48
    %v50 = vrcp.pop %v34
    %v51 = vmul.f32 %v34, %v50
    %v52 = vsub.f32 1.0, %v51
    %v53 = vmul.f32 %v50, %v52
    %v54 = vadd.f32 %v50, %v53
    %vm55 = vweird.f32 %v34
    %vm56 = vweird.f32 %v50
    %vm57 = vmor %vm55, %vm56
    %v58 = vsel %vm57, %v50, %v54
    %v59 = vand.u32 2147483647, %v34
    %vm60 = vcmp.eq.f32.partialorder %v59, 8.507059e+37
    %v61 = vand.u32 %v34, 2147483648
    %v62 = vor.u32 1.1754944e-38, %v61
    %v63 = vsel %vm60, %v62, %v58
    %v64 = vmul.f32 1.0, %v63
    %v65 = vmul.f32 %v25, %v49
    %v66 = vmul.f32 %v26, %v64
    %69 = vrot.lane.b32.xlu0 %v65, 96
    %v70 = vpop.permute.xlu0 %69
    %71 = vrot.lane.b32.xlu0 %v66, 96
    %v72 = vpop.permute.xlu0 %71
    %v75 = vmul.f32 %v25, %v70
    %v76 = vmul.f32 %v26, %v72
    %vm77 = vcmask 261120
    %78 = vst.msk [vmem:[#allocation5] sm:$0xff] %vm77, %v75
    %79 = vst.msk [vmem:[#allocation5 + $0x8] sm:$0xff] %vm77, %v76
    // Predicated region
    $region10: #{tpu_custom_call.1} parent=1 // pred_check
      _
    $region11: #{tpu_custom_call.1} parent=1 // pred_check_branch
      %81 = sbr.rel (0) target = $region13
    $region12: #{tpu_custom_call.1} parent=1 // pred_region
      %83 = vsyncadd [#allocation4], 0
      %s84 = sshll.u32 [#allocation5], 4
      %s85 = int_to_ptr.vmem [resolvable:$true] %s84
      %s86 = sshll.u32 %s1, 4
      %s87 = int_to_ptr.hbm [resolvable:$true] %s86
      %92 = dma.vmem_to_hbm [thread:$0]  %s85, 256, %s87, [#allocation4], 128, 128, 8
    $region13: #{tpu_custom_call.1} parent=1 // pred_fallthru
      _
    // Predicated region
    $region14: #{tpu_custom_call.1} parent=1 // pred_check
      _
    $region15: #{tpu_custom_call.1} parent=1 // pred_check_branch
      %94 = sbr.rel (0) target = $region17
    $region16: #{tpu_custom_call.1} parent=1 // pred_region
      %96 = dma.done [#allocation4], 256
    $region17: #{tpu_custom_call.1} parent=1 // pred_fallthru
      _
    %97 = vsyncpa [#allocation3], 1
    %98 = vsyncpa [#allocation4], 1

</llo_original>
